<compile_context>
chip_gen: v5e
topology: v5e:2x2
jax: 0.10.0
libtpu: 0.0.40
codegen_flags: <defaults>
</compile_context>

<pallas_src>
import functools

import jax
import jax.numpy as jnp
from jax.experimental import pallas as pl
from jax.experimental.pallas import tpu as pltpu


def _gn_relu_pwconv_kernel(x_ref, w_ref, gb_ref, o_ref, *, eps, s_valid, tb):
    # x_ref:  (TB, Cin, S_pad)  activations, spatial flattened & lane-dense
    # w_ref:  (Cout, Cin)       1x1x1 conv weight (grid-invariant, resident)
    # gb_ref: (2, Cin, 1)       GroupNorm gamma (row 0) / beta (row 1)
    # o_ref:  (TB, Cout, S_pad) output block
    x = x_ref[...].astype(jnp.float32)          # (TB, Cin, S_pad)
    s_pad = x.shape[-1]
    inv_n = 1.0 / s_valid

    # GroupNorm with num_groups == num_channels: per-(sample, channel) stats
    # over the spatial (lane) axis. Two-pass centered variance (numerically
    # safe; PyTorch GN uses the biased estimator).
    if s_valid == s_pad:
        mean = jnp.mean(x, axis=-1, keepdims=True)          # (TB, Cin, 1)
        xc = x - mean
        var = jnp.mean(xc * xc, axis=-1, keepdims=True)
    else:
        # Spatial axis was zero-padded up to a multiple of 128: padded columns
        # contribute nothing to sum, and are masked out of the variance.
        col = jax.lax.broadcasted_iota(jnp.int32, x.shape, dimension=2)
        valid = col < s_valid
        mean = jnp.sum(x, axis=-1, keepdims=True) * inv_n
        xc = jnp.where(valid, x - mean, 0.0)
        var = jnp.sum(xc * xc, axis=-1, keepdims=True) * inv_n

    inv = jax.lax.rsqrt(var + eps)                          # EUP rsqrt
    g = gb_ref[0]                                           # (Cin, 1)
    b = gb_ref[1]                                           # (Cin, 1)
    h = jnp.maximum(xc * inv * g + b, 0.0)                  # affine + ReLU

    # 1x1x1 Conv3d == channel-mixing matmul on the MXU (no bias). One dot per
    # sample keeps both the contraction layout and the (Cout, S) store dense
    # (no transposes / relayouts); TB is small and statically unrolled.
    w = w_ref[...].astype(jnp.float32)
    for t in range(tb):
        o_ref[t] = jnp.dot(w, h[t],
                           preferred_element_type=jnp.float32).astype(o_ref.dtype)


def gn_ac_conv3d(x, conv_weight, gn_gamma, gn_beta, *, eps=1e-5, out_dtype=None):
    """Fused forward of GN_AC_CONV3D (default 1x1x1 / stride 1 / no-bias config).

    x:           (B, Cin, T, H, W)
    conv_weight: (Cout, Cin, 1, 1, 1)
    gn_gamma:    (Cin,)
    gn_beta:     (Cin,)
    returns:     (B, Cout, T, H, W) in out_dtype (default: x.dtype)
    """
    B, Cin, T, H, W = x.shape
    Cout = conv_weight.shape[0]
    assert conv_weight.shape == (Cout, Cin, 1, 1, 1), "only 1x1x1 conv supported"
    out_dtype = x.dtype if out_dtype is None else out_dtype

    S = T * H * W
    S_pad = ((S + 127) // 128) * 128             # enforce lane-dense spatial axis

    x2 = x.reshape(B, Cin, S).astype(jnp.float32)
    if S_pad != S:
        x2 = jnp.pad(x2, ((0, 0), (0, 0), (0, S_pad - S)))
    w2 = conv_weight.reshape(Cout, Cin).astype(jnp.float32)
    gb = jnp.stack([gn_gamma.astype(jnp.float32),
                    gn_beta.astype(jnp.float32)], axis=0).reshape(2, Cin, 1)

    # ---- batch-tile (TB) selection ------------------------------------------
    # One grid step moves TB * (Cin + Cout) * S_pad * 4 bytes of activations.
    # Budget ~12 MiB of in+out block per step (double-buffered -> ~24 MiB of
    # VMEM), sized for v7x's 64 MiB physical VMEM; keep >= 2 parallel grid
    # steps when B >= 2 so both v7x TensorCores get work (1 TC on v5e/v6e, so
    # nothing is lost there).
    bytes_per_sample = 4 * (Cin + Cout) * S_pad
    block_budget = 12 * 1024 * 1024
    tb = max(1, min(B, block_budget // max(bytes_per_sample, 1)))
    if B >= 2:
        tb = max(1, min(tb, B // 2))
    tb = min(tb, 64)                             # cap static unroll of the dot loop
    while B % tb:                                # make TB divide B evenly
        tb -= 1
    grid = (B // tb,)

    # Raise the scoped VMEM limit above the 16/32 MiB defaults, with headroom,
    # but stay under v7x's 64 MiB physical VMEM.
    vmem_need = 2 * tb * bytes_per_sample + 4 * Cout * Cin + 4 * 2 * Cin
    vmem_limit = int(min(56 * 1024 * 1024, max(32 * 1024 * 1024, 2 * vmem_need)))

    out = pl.pallas_call(
        functools.partial(_gn_relu_pwconv_kernel, eps=eps, s_valid=S, tb=tb),
        out_shape=jax.ShapeDtypeStruct((B, Cout, S_pad), out_dtype),
        grid_spec=pltpu.PrefetchScalarGridSpec(
            num_scalar_prefetch=0,
            grid=grid,
            in_specs=[
                pl.BlockSpec((tb, Cin, S_pad), lambda i: (i, 0, 0)),   # x tile
                pl.BlockSpec((Cout, Cin), lambda i: (0, 0)),           # weight (resident)
                pl.BlockSpec((2, Cin, 1), lambda i: (0, 0, 0)),        # gamma/beta (resident)
            ],
            out_specs=pl.BlockSpec((tb, Cout, S_pad), lambda i: (i, 0, 0)),
        ),
        compiler_params=pltpu.CompilerParams(
            dimension_semantics=("parallel",),
            vmem_limit_bytes=vmem_limit),
    )(x2, w2, gb)

    if S_pad != S:
        out = out[:, :, :S]
    return out.reshape(B, Cout, T, H, W)


def _reference(x, conv_weight, gn_gamma, gn_beta, *, eps=1e-5):
    """Pure-JAX reference of the PyTorch forward."""
    B, Cin, T, H, W = x.shape
    Cout = conv_weight.shape[0]
    xf = x.reshape(B, Cin, -1)
    m = xf.mean(-1, keepdims=True)
    v = ((xf - m) ** 2).mean(-1, keepdims=True)
    h = (xf - m) * jax.lax.rsqrt(v + eps)
    h = h * gn_gamma[None, :, None] + gn_beta[None, :, None]
    h = jnp.maximum(h, 0.0)
    w2 = conv_weight.reshape(Cout, Cin)
    out = jnp.einsum("oc,bcs->bos", w2, h)
    return out.reshape(B, Cout, T, H, W)


if __name__ == "__main__":
    # Small shapes consistent with the module: batch=2, channels=4 -> 8 filters,
    # spatial (T,H,W) = (4,16,16) so S = 1024 (lane-dense multiple of 128).
    B, Cin, Cout = 2, 4, 8
    T, H, W = 4, 16, 16

    key = jax.random.PRNGKey(0)
    k_x, k_w, k_g, k_b = jax.random.split(key, 4)

    x = jax.random.normal(k_x, (B, Cin, T, H, W), dtype=jnp.float32)
    # Conv3d default init: uniform in +-1/sqrt(fan_in), fan_in = Cin*1*1*1
    bound = 1.0 / jnp.sqrt(jnp.float32(Cin))
    conv_w = jax.random.uniform(k_w, (Cout, Cin, 1, 1, 1),
                                minval=-bound, maxval=bound, dtype=jnp.float32)
    # Random affine params to exercise the GN path (PyTorch default is 1/0).
    gn_gamma = 1.0 + 0.1 * jax.random.normal(k_g, (Cin,), dtype=jnp.float32)
    gn_beta = 0.1 * jax.random.normal(k_b, (Cin,), dtype=jnp.float32)

    out = gn_ac_conv3d(x, conv_w, gn_gamma, gn_beta)
    out = jax.block_until_ready(out)

    ref = _reference(x, conv_w, gn_gamma, gn_beta)
    assert out.shape == (B, Cout, T, H, W), out.shape
    assert jnp.allclose(out, ref, atol=1e-5, rtol=1e-5), "mismatch vs reference"

    print("KERNEL_OK")
</pallas_src>

<mosaic_0001>
module attributes {stable_mosaic.version = 11 : i64} {
  func.func @_gn_relu_pwconv_kernel(%arg0: i32, %arg1: memref<1x4x1024xf32, #tpu.memory_space<vmem>>, %arg2: memref<8x4xf32, #tpu.memory_space<vmem>>, %arg3: memref<2x4x1xf32, #tpu.memory_space<vmem>>, %arg4: memref<1x8x1024xf32, #tpu.memory_space<vmem>>) attributes {dimension_semantics = [#tpu.dimension_semantics<parallel>], iteration_bounds = array<i64: 2>, scalar_prefetch = 0 : i64, scratch_operands = 0 : i64, tpu.core_type = #tpu.core_type<tc>, window_params = [{transform_indices = @transform_0, window_bounds = array<i64: 1, 4, 1024>}, {pipeline_mode = #tpu.pipeline_mode<synchronous>, transform_indices = @transform_1, window_bounds = array<i64: 8, 4>}, {pipeline_mode = #tpu.pipeline_mode<synchronous>, transform_indices = @transform_2, window_bounds = array<i64: 2, 4, 1>}, {transform_indices = @transform_3, window_bounds = array<i64: 1, 8, 1024>}]} {
    %c0 = arith.constant 0 : index
    %c0_0 = arith.constant 0 : index
    %c0_1 = arith.constant 0 : index
    %0 = vector.load %arg1[%c0, %c0_0, %c0_1] : memref<1x4x1024xf32, #tpu.memory_space<vmem>>, vector<1x4x1024xf32>
    %cst = arith.constant dense<0.000000e+00> : vector<1x4xf32>
    %1 = vector.multi_reduction <add>, %0, %cst [2] : vector<1x4x1024xf32> to vector<1x4xf32>
    %2 = vector.shape_cast %1 : vector<1x4xf32> to vector<1x4x1xf32>
    %cst_2 = arith.constant 1.024000e+03 : f32
    %3 = vector.broadcast %cst_2 : f32 to vector<1x4x1xf32>
    %4 = arith.divf %2, %3 : vector<1x4x1xf32>
    %5 = vector.broadcast %4 : vector<1x4x1xf32> to vector<1x4x1024xf32>
    %6 = arith.subf %0, %5 : vector<1x4x1024xf32>
    %7 = arith.mulf %6, %6 : vector<1x4x1024xf32>
    %cst_3 = arith.constant dense<0.000000e+00> : vector<1x4xf32>
    %8 = vector.multi_reduction <add>, %7, %cst_3 [2] : vector<1x4x1024xf32> to vector<1x4xf32>
    %9 = vector.shape_cast %8 : vector<1x4xf32> to vector<1x4x1xf32>
    %cst_4 = arith.constant 1.024000e+03 : f32
    %10 = vector.broadcast %cst_4 : f32 to vector<1x4x1xf32>
    %11 = arith.divf %9, %10 : vector<1x4x1xf32>
    %cst_5 = arith.constant 9.99999974E-6 : f32
    %12 = vector.broadcast %cst_5 : f32 to vector<1x4x1xf32>
    %13 = arith.addf %11, %12 : vector<1x4x1xf32>
    %14 = math.rsqrt %13 : vector<1x4x1xf32>
    %c0_6 = arith.constant 0 : index
    %c0_7 = arith.constant 0 : index
    %c0_8 = arith.constant 0 : index
    %15 = vector.load %arg3[%c0_6, %c0_7, %c0_8] : memref<2x4x1xf32, #tpu.memory_space<vmem>>, vector<1x4x1xf32>
    %16 = vector.shape_cast %15 : vector<1x4x1xf32> to vector<4x1xf32>
    %c1 = arith.constant 1 : index
    %c0_9 = arith.constant 0 : index
    %c0_10 = arith.constant 0 : index
    %17 = vector.load %arg3[%c1, %c0_9, %c0_10] : memref<2x4x1xf32, #tpu.memory_space<vmem>>, vector<1x4x1xf32>
    %18 = vector.shape_cast %17 : vector<1x4x1xf32> to vector<4x1xf32>
    %19 = vector.broadcast %14 : vector<1x4x1xf32> to vector<1x4x1024xf32>
    %20 = arith.mulf %6, %19 : vector<1x4x1024xf32>
    %21 = vector.shape_cast %16 : vector<4x1xf32> to vector<1x4x1xf32>
    %22 = vector.broadcast %21 : vector<1x4x1xf32> to vector<1x4x1024xf32>
    %23 = arith.mulf %20, %22 : vector<1x4x1024xf32>
    %24 = vector.shape_cast %18 : vector<4x1xf32> to vector<1x4x1xf32>
    %25 = vector.broadcast %24 : vector<1x4x1xf32> to vector<1x4x1024xf32>
    %26 = arith.addf %23, %25 : vector<1x4x1024xf32>
    %cst_11 = arith.constant 0.000000e+00 : f32
    %27 = vector.broadcast %cst_11 : f32 to vector<1x4x1024xf32>
    %28 = arith.maximumf %26, %27 : vector<1x4x1024xf32>
    %c0_12 = arith.constant 0 : index
    %c0_13 = arith.constant 0 : index
    %29 = vector.load %arg2[%c0_12, %c0_13] : memref<8x4xf32, #tpu.memory_space<vmem>>, vector<8x4xf32>
    %30 = vector.shape_cast %28 : vector<1x4x1024xf32> to vector<4x1024xf32>
    %cst_14 = arith.constant dense<0.000000e+00> : vector<8x1024xf32>
    %31 = tpu.matmul %29, %30, %cst_14 {dimension_numbers = #tpu.dot_dimension_numbers<[1], [0], [0], [1], [0, 0, 1, 1], [], []>} : vector<8x4xf32>, vector<4x1024xf32>, vector<8x1024xf32> -> vector<8x1024xf32>
    %c0_15 = arith.constant 0 : index
    %c0_16 = arith.constant 0 : index
    %c0_17 = arith.constant 0 : index
    %32 = vector.load %arg4[%c0_15, %c0_16, %c0_17] : memref<1x8x1024xf32, #tpu.memory_space<vmem>>, vector<1x8x1024xf32>
    %33 = vector.shape_cast %32 : vector<1x8x1024xf32> to vector<8x1024xf32>
    %34 = vector.shape_cast %31 : vector<8x1024xf32> to vector<1x8x1024xf32>
    tpu.vector_store %arg4[%c0_15, %c0_16, %c0_17], %34 {strides = array<i32>} : memref<1x8x1024xf32, #tpu.memory_space<vmem>>, vector<1x8x1024xf32>,
    return
  }
  func.func @transform_0(%arg0: i32) -> (i32, i32, i32) {
    %c0_i32 = arith.constant 0 : i32
    %c0_i32_0 = arith.constant 0 : i32
    %c0_i32_1 = arith.constant 0 : i32
    return %arg0, %c0_i32, %c0_i32_0 : i32, i32, i32
  }
  func.func @transform_1(%arg0: i32) -> (i32, i32) {
    %c0_i32 = arith.constant 0 : i32
    %c0_i32_0 = arith.constant 0 : i32
    %c0_i32_1 = arith.constant 0 : i32
    return %c0_i32, %c0_i32_0 : i32, i32
  }
  func.func @transform_2(%arg0: i32) -> (i32, i32, i32) {
    %c0_i32 = arith.constant 0 : i32
    %c0_i32_0 = arith.constant 0 : i32
    %c0_i32_1 = arith.constant 0 : i32
    %c0_i32_2 = arith.constant 0 : i32
    return %c0_i32, %c0_i32_0, %c0_i32_1 : i32, i32, i32
  }
  func.func @transform_3(%arg0: i32) -> (i32, i32, i32) {
    %c0_i32 = arith.constant 0 : i32
    %c0_i32_0 = arith.constant 0 : i32
    %c0_i32_1 = arith.constant 0 : i32
    return %arg0, %c0_i32, %c0_i32_0 : i32, i32, i32
  }
}

</mosaic_0001>

<llo_original>
// kernel: tpu_custom_call.1
$region0: #{tpu_custom_call.1}
  #allocation0 [shape = 'u32[]', space=smem, size = 0x4, offset = 0x4, fixed_abs, tag = 'smem constant byte address 0x4 - core index']
  #allocation1 [shape = 'u32[72,128]{1,0:T(1,128)}', space=vmem, size = 0x9000, scoped, tag = 'internal scratch']
  %s0 = inlined_call_operand.hbm [shape: f32[2,4,1024], index: 0, kind: input, shape index: {}]
  %s1 = inlined_call_operand.vmem [shape: f32[8,4], index: 1, kind: input, shape index: {}]
  %s2 = inlined_call_operand.vmem [shape: f32[2,4,1], index: 2, kind: input, shape index: {}]
  %s3 = inlined_call_operand.hbm [shape: f32[2,8,1024], index: 3, kind: output, shape index: {}]
  %s4 = sld [smem:[#allocation0]]
  $region49: #{tpu_custom_call.1} parent=0
    _
  %s6 = ssub.s32 1, %s4
  %s7 = scalar_select 0, %s6, %s4
  $region1: #{tpu_custom_call.1} parent=0
    #allocation2 [shape = 'u8[32768]{0}', space=vmem, size = 0x8000, scoped, tag = 'input window, operand 0']
    #allocation3 [shape = 's32[2]{0}', space=sflag, size = 0x8, scoped, tag = 'scoped memory for tpu_custom_call.1']
    #allocation4 [shape = 's32[2]{0}', space=sflag, size = 0x8, scoped, tag = 'scoped memory for tpu_custom_call.1']
    #allocation5 [shape = 'u8[65536]{0}', space=vmem, size = 0x10000, scoped, tag = 'output window, operand 0']
    %8 = vsyncpa [#allocation3], 0
    %s9 = scalar_lea.sflag [#allocation3], 1
    %10 = vsyncpa %s9, 0
    %11 = vsyncpa [#allocation4], 0
    %s12 = scalar_lea.sflag [#allocation4], 1
    %13 = vsyncpa %s12, 0
    loop: start=0, step=1, limit=4
    $region2: #{tpu_custom_call.1} parent=1 // loop_pre_header
      _
    $region3: #{tpu_custom_call.1} parent=1 // loop_header
      %s15 = sphi 0, %s19
      %p16 = scmp.ge.s32.totalorder %s15, 4
      %s25 = sphi 0, %s27
      %s28 = sphi 0, %s25
      %s29 = sphi 0, %s28
      %s45 = sphi 0, %s29
      %s49 = sphi 0, %s49
      %s51 = sphi 0, %s49
      %s52 = sphi 0, %s51
      %s66 = sphi 0, %s52
      %s70 = sphi 0, %s70
      %s72 = sphi 0, %s70
      %s73 = sphi 0, %s72
      %s87 = sphi 0, %s73
      %s93 = sphi 0, %s95
      %s96 = sphi 0, %s93
      %s97 = sphi 0, %s96
      %s113 = sphi 0, %s97
    $region4: #{tpu_custom_call.1} parent=1 // loop_header_branch
      %18 = sbr.rel (%p16) target = $region8
    $region5: #{tpu_custom_call.1} parent=1 // loop_body
      %s20 = ssub.s32 %s15, 1
      %s21 = ssub.s32 %s15, 2
      %s22 = sadd.s32 %s15, 1
      %s23 = ssub.s32 %s15, %s22
      %p24 = scmp.eq.s32.totalorder %s23, 0
      %s26 = sadd.s32 %s25, 1
      %s27 = scalar_select %p24, %s25, %s26
      %p30 = pneg %p24
      %p31 = scmp.eq.s32.totalorder %s15, 1
      %p32 = por %p30, %p31
      %p33 = scmp.ne.s32.totalorder %s25, %s28
      %p34 = scmp.eq.s32.totalorder %s15, 0
      %p35 = por %p33, %p34
      %p36 = scmp.ne.s32.totalorder %s25, %s28
      %p37 = scmp.eq.s32.totalorder %s20, 1
      %p38 = por %p36, %p37
      %p39 = scmp.ne.s32.totalorder %s28, %s29
      %p40 = scmp.eq.s32.totalorder %s20, 0
      %p41 = por %p39, %p40
      %p42 = scmp.ne.s32.totalorder %s28, %s29
      %p43 = scmp.eq.s32.totalorder %s21, 1
      %p44 = por %p42, %p43
      %p46 = scmp.ne.s32.totalorder %s29, %s45
      %p47 = scmp.eq.s32.totalorder %s21, 0
      %p48 = por %p46, %p47
      %s50 = sadd.s32 %s49, 1
      %p53 = scmp.eq.s32.totalorder %s15, 1
      %p54 = scmp.ne.s32.totalorder %s49, %s51
      %p55 = scmp.eq.s32.totalorder %s15, 0
      %p56 = por %p54, %p55
      %p57 = scmp.ne.s32.totalorder %s49, %s51
      %p58 = scmp.eq.s32.totalorder %s20, 1
      %p59 = por %p57, %p58
      %p60 = scmp.ne.s32.totalorder %s51, %s52
      %p61 = scmp.eq.s32.totalorder %s20, 0
      %p62 = por %p60, %p61
      %p63 = scmp.ne.s32.totalorder %s51, %s52
      %p64 = scmp.eq.s32.totalorder %s21, 1
      %p65 = por %p63, %p64
      %p67 = scmp.ne.s32.totalorder %s52, %s66
      %p68 = scmp.eq.s32.totalorder %s21, 0
      %p69 = por %p67, %p68
      %s71 = sadd.s32 %s70, 1
      %p74 = scmp.eq.s32.totalorder %s15, 1
      %p75 = scmp.ne.s32.totalorder %s70, %s72
      %p76 = scmp.eq.s32.totalorder %s15, 0
      %p77 = por %p75, %p76
      %p78 = scmp.ne.s32.totalorder %s70, %s72
      %p79 = scmp.eq.s32.totalorder %s20, 1
      %p80 = por %p78, %p79
      %p81 = scmp.ne.s32.totalorder %s72, %s73
      %p82 = scmp.eq.s32.totalorder %s20, 0
      %p83 = por %p81, %p82
      %p84 = scmp.ne.s32.totalorder %s72, %s73
      %p85 = scmp.eq.s32.totalorder %s21, 1
      %p86 = por %p84, %p85
      %p88 = scmp.ne.s32.totalorder %s73, %s87
      %p89 = scmp.eq.s32.totalorder %s21, 0
      %p90 = por %p88, %p89
      %s91 = ssub.s32 %s15, %s22
      %p92 = scmp.eq.s32.totalorder %s91, 0
      %s94 = sadd.s32 %s93, 1
      %s95 = scalar_select %p92, %s93, %s94
      %p98 = pneg %p92
      %p99 = scmp.eq.s32.totalorder %s15, 1
      %p100 = por %p98, %p99
      %p101 = scmp.ne.s32.totalorder %s93, %s96
      %p102 = scmp.eq.s32.totalorder %s15, 0
      %p103 = por %p101, %p102
      %p104 = scmp.ne.s32.totalorder %s93, %s96
      %p105 = scmp.eq.s32.totalorder %s20, 1
      %p106 = por %p104, %p105
      %p107 = scmp.ne.s32.totalorder %s96, %s97
      %p108 = scmp.eq.s32.totalorder %s20, 0
      %p109 = por %p107, %p108
      %p110 = scmp.ne.s32.totalorder %s96, %s97
      %p111 = scmp.eq.s32.totalorder %s21, 1
      %p112 = por %p110, %p111
      %p114 = scmp.ne.s32.totalorder %s97, %s113
      %p115 = scmp.eq.s32.totalorder %s21, 0
      %p116 = por %p114, %p115
      %p117 = scmp.le.s32.totalorder 1, %s15
      %p118 = scmp.lt.s32.totalorder %s15, 3
      %p119 = pnand %p117, %p118
      %p120 = pneg %p119
      // Predicated region
      $region9: #{tpu_custom_call.1} parent=5 // pred_check
        _
      $region10: #{tpu_custom_call.1} parent=5 // pred_check_branch
        %122 = sbr.rel (%p119) target = $region12
      $region11: #{tpu_custom_call.1} parent=5 // pred_region
        %s123 = ssub.s32 %s15, 1
        // Predicated region
        $region13: #{tpu_custom_call.1} parent=11 // pred_check
          %p124 = pneg %p62
        $region14: #{tpu_custom_call.1} parent=11 // pred_check_branch
          %126 = sbr.rel (%p124) target = $region16
        $region15: #{tpu_custom_call.1} parent=11 // pred_region
          _
        $region16: #{tpu_custom_call.1} parent=11 // pred_fallthru
          _
        // Predicated region
        $region17: #{tpu_custom_call.1} parent=11 // pred_check
          %p127 = pneg %p83
        $region18: #{tpu_custom_call.1} parent=11 // pred_check_branch
          %129 = sbr.rel (%p127) target = $region20
        $region19: #{tpu_custom_call.1} parent=11 // pred_region
          _
        $region20: #{tpu_custom_call.1} parent=11 // pred_fallthru
          _
      $region12: #{tpu_custom_call.1} parent=5 // pred_fallthru
        _
      %p130 = scmp.lt.s32.totalorder %s15, 2
      // Predicated region
      $region21: #{tpu_custom_call.1} parent=5 // pred_check
        %p131 = pneg %p130
      $region22: #{tpu_custom_call.1} parent=5 // pred_check_branch
        %133 = sbr.rel (%p131) target = $region24
      $region23: #{tpu_custom_call.1} parent=5 // pred_region
        // Predicated region
        $region25: #{tpu_custom_call.1} parent=23 // pred_check
          %p134 = pneg %p35
        $region26: #{tpu_custom_call.1} parent=23 // pred_check_branch
          %136 = sbr.rel (%p134) target = $region28
        $region27: #{tpu_custom_call.1} parent=23 // pred_region
          %s137 = sand.u32 %s25, 1
          %s138 = scalar_lea.sflag [#allocation3], %s137
          %s139 = sand.u32 %s25, 1
          %s140 = smul.addr %s139, 32
          %s141 = scalar_lea.vmem [#allocation2], %s140
          %143 = vsyncadd %s138, 0
          %s144 = smul.addr %s15, 8
          %s145 = smul.addr %s144, 4
          %s146 = scalar_lea.hbm %s0, %s145
          %s148 = sshll.u32 %s146, 4
          %s149 = int_to_ptr.hbm [resolvable:$true] %s148
          %s150 = sshll.u32 %s141, 4
          %s151 = int_to_ptr.vmem [resolvable:$true] %s150
          %153 = dma.hbm_to_vmem [thread:$0]  %s149, 512, %s151, %s138
        $region28: #{tpu_custom_call.1} parent=23 // pred_fallthru
          _
      $region24: #{tpu_custom_call.1} parent=5 // pred_fallthru
        _
      %p154 = scmp.le.s32.totalorder 1, %s15
      %p155 = scmp.lt.s32.totalorder %s15, 3
      %p156 = pnand %p154, %p155
      %p157 = pneg %p156
      // Predicated region
      $region29: #{tpu_custom_call.1} parent=5 // pred_check
        _
      $region30: #{tpu_custom_call.1} parent=5 // pred_check_branch
        %159 = sbr.rel (%p156) target = $region32
      $region31: #{tpu_custom_call.1} parent=5 // pred_region
        %s160 = ssub.s32 %s15, 1
        %s161 = sand.u32 %s28, 1
        %s162 = scalar_lea.sflag [#allocation3], %s161
        %s163 = sand.u32 %s28, 1
        %s164 = smul.addr %s163, 32
        %s165 = scalar_lea.vmem [#allocation2], %s164
        // Predicated region
        $region33: #{tpu_custom_call.1} parent=31 // pred_check
          %p166 = pneg %p41
        $region34: #{tpu_custom_call.1} parent=31 // pred_check_branch
          %168 = sbr.rel (%p166) target = $region36
        $region35: #{tpu_custom_call.1} parent=31 // pred_region
          %170 = dma.done %s162, 512
        $region36: #{tpu_custom_call.1} parent=31 // pred_fallthru
          _
        %s171 = sand.u32 %s28, 1
        %s172 = scalar_lea.sflag [#allocation3], %s171
        %s173 = sand.u32 %s28, 1
        %s174 = smul.addr %s173, 32
        %s175 = scalar_lea.vmem [#allocation2], %s174
        %p176 = pneg %p41
        %p177 = pneg %p38
        %p178 = pneg %p62
        %p179 = pneg %p59
        %p180 = pneg %p83
        %p181 = pneg %p80
        %p182 = pneg %p109
        %p183 = pneg %p106
        %s184 = sand.u32 %s96, 1
        %s185 = scalar_lea.sflag [#allocation4], %s184
        %s186 = sand.u32 %s96, 1
        %s187 = smul.addr %s186, 64
        %s188 = scalar_lea.vmem [#allocation5], %s187
        %v189 = vld [vmem:[%s165] sm:$0xff]
        %v190 = vld [vmem:[%s165 + $0x8] sm:$0xff]
        %v191 = vld [vmem:[%s165 + $0x10] sm:$0xff]
        %v192 = vld [vmem:[%s165 + $0x18] sm:$0xff]
        %197 = vst [vmem:[#allocation1] ss:$2 sm:$0xff] %v189
        %s198 = scalar_lea.vmem [#allocation1], 16
        %199 = vst [vmem:[%s198] ss:$2 sm:$0xff] %v190
        %s200 = scalar_lea.vmem [#allocation1], 32
        %201 = vst [vmem:[%s200] ss:$2 sm:$0xff] %v191
        %s202 = scalar_lea.vmem [#allocation1], 48
        %203 = vst [vmem:[%s202] ss:$2 sm:$0xff] %v192
        %v204 = vld.sshfl [vmem:[#allocation1] sm:$0xff pattern:$0x75316420]
        %v205 = vld.sshfl [vmem:[#allocation1 + $0x8] sm:$0xff pattern:$0x75316420]
        %v206 = vld.sshfl [vmem:[#allocation1 + $0x10] sm:$0xff pattern:$0x75316420]
        %v207 = vld.sshfl [vmem:[#allocation1 + $0x18] sm:$0xff pattern:$0x75316420]
        %v208 = vld.sshfl [vmem:[#allocation1 + $0x20] sm:$0xff pattern:$0x75316420]
        %v209 = vld.sshfl [vmem:[#allocation1 + $0x28] sm:$0xff pattern:$0x75316420]
        %v210 = vld.sshfl [vmem:[#allocation1 + $0x30] sm:$0xff pattern:$0x75316420]
        %v211 = vld.sshfl [vmem:[#allocation1 + $0x38] sm:$0xff pattern:$0x75316420]
        %vm220 = vcmask 1043456
        %v221 = vsel %vm220, %v204, 0.0
        %v222 = vsel %vm220, %v205, 0.0
        %v223 = vadd.f32 %v221, %v222
        %v224 = vsel %vm220, %v206, 0.0
        %v225 = vadd.f32 %v223, %v224
        %v226 = vsel %vm220, %v207, 0.0
        %v227 = vadd.f32 %v225, %v226
        %v228 = vsel %vm220, %v208, 0.0
        %v229 = vadd.f32 %v227, %v228
        %v230 = vsel %vm220, %v209, 0.0
        %v231 = vadd.f32 %v229, %v230
        %v232 = vsel %vm220, %v210, 0.0
        %v233 = vadd.f32 %v231, %v232
        %v234 = vsel %vm220, %v211, 0.0
        %v235 = vadd.f32 %v233, %v234
        %236 = vadd.xlane.f32.xlu0 %v235
        %v237 = vpop.xlane.xlu0 %236
        %v238 = vrcp.pop 1024.0
        %v239 = vmul.f32 1024.0, %v238
        %v240 = vsub.f32 1.0, %v239
        %v241 = vmul.f32 %v238, %v240
        %v242 = vadd.f32 %v238, %v241
        %vm243 = vweird.f32 %v238
        %v244 = vsel %vm243, %v238, %v242
        %v245 = vmul.f32 %v237, %v244
        %v248 = vunpack.c.l.s4 839922192
        %v249 = vunpack.c.0.s8 %v248
        %v250 = vperm.slane %v245, %v249
        %v252 = vsub.f32 %v189, %v250
        %v253 = vsub.f32 %v190, %v250
        %v254 = vsub.f32 %v191, %v250
        %v255 = vsub.f32 %v192, %v250
        %v256 = vmul.f32 %v252, %v252
        %v257 = vmul.f32 %v253, %v253
        %v258 = vmul.f32 %v254, %v254
        %v259 = vmul.f32 %v255, %v255
        %264 = vst [vmem:[#allocation1] ss:$2 sm:$0xff] %v256
        %s265 = scalar_lea.vmem [#allocation1], 16
        %266 = vst [vmem:[%s265] ss:$2 sm:$0xff] %v257
        %s267 = scalar_lea.vmem [#allocation1], 32
        %268 = vst [vmem:[%s267] ss:$2 sm:$0xff] %v258
        %s269 = scalar_lea.vmem [#allocation1], 48
        %270 = vst [vmem:[%s269] ss:$2 sm:$0xff] %v259
        %v271 = vld.sshfl [vmem:[#allocation1] sm:$0xff pattern:$0x75316420]
        %v272 = vld.sshfl [vmem:[#allocation1 + $0x8] sm:$0xff pattern:$0x75316420]
        %v273 = vld.sshfl [vmem:[#allocation1 + $0x10] sm:$0xff pattern:$0x75316420]
        %v274 = vld.sshfl [vmem:[#allocation1 + $0x18] sm:$0xff pattern:$0x75316420]
        %v275 = vld.sshfl [vmem:[#allocation1 + $0x20] sm:$0xff pattern:$0x75316420]
        %v276 = vld.sshfl [vmem:[#allocation1 + $0x28] sm:$0xff pattern:$0x75316420]
        %v277 = vld.sshfl [vmem:[#allocation1 + $0x30] sm:$0xff pattern:$0x75316420]
        %v278 = vld.sshfl [vmem:[#allocation1 + $0x38] sm:$0xff pattern:$0x75316420]
        %v287 = vsel %vm220, %v271, 0.0
        %v288 = vsel %vm220, %v272, 0.0
        %v289 = vadd.f32 %v287, %v288
        %v290 = vsel %vm220, %v273, 0.0
        %v291 = vadd.f32 %v289, %v290
        %v292 = vsel %vm220, %v274, 0.0
        %v293 = vadd.f32 %v291, %v292
        %v294 = vsel %vm220, %v275, 0.0
        %v295 = vadd.f32 %v293, %v294
        %v296 = vsel %vm220, %v276, 0.0
        %v297 = vadd.f32 %v295, %v296
        %v298 = vsel %vm220, %v277, 0.0
        %v299 = vadd.f32 %v297, %v298
        %v300 = vsel %vm220, %v278, 0.0
        %v301 = vadd.f32 %v299, %v300
        %302 = vadd.xlane.f32.xlu0 %v301
        %v303 = vpop.xlane.xlu0 %302
        %v304 = vmul.f32 %v303, %v244
        %v305 = vadd.f32 %v304, 1e-05
        %v306 = vrsqrt.pop %v305
        %v307 = vmul.f32 %v306, %v305
        %v308 = vmul.f32 %v307, %v306
        %v309 = vmul.f32 0.5, %v308
        %v310 = vsub.f32 1.5, %v309
        %v311 = vmul.f32 %v306, %v310
        %vm312 = vweird.f32 %v305
        %vm313 = vweird.f32 %v306
        %vm314 = vmor %vm312, %vm313
        %v315 = vsel %vm314, %v306, %v311
        %v316 = vld [vmem:[%s2] sm:$0xf]
        %s317 = scalar_lea.vmem %s2, 4
        %v318 = vld [vmem:[%s317] sm:$0xf]
        %v321 = vunpack.c.l.s4 839922192
        %v322 = vunpack.c.0.s8 %v321
        %v323 = vperm.slane %v315, %v322
        %v325 = vmul.f32 %v252, %v323
        %v326 = vmul.f32 %v253, %v323
        %v327 = vmul.f32 %v254, %v323
        %v328 = vmul.f32 %v255, %v323
        %330 = vset.pattern.permute.xlu0 0
        %331 = vperm.xlu0 %330, %v316
        %v332 = vpop.permute.xlu0 %331
        %v334 = vunpack.c.l.s4 839922192
        %v335 = vunpack.c.0.s8 %v334
        %v336 = vperm.slane %v332, %v335
        %v338 = vmul.f32 %v325, %v336
        %v339 = vmul.f32 %v326, %v336
        %v340 = vmul.f32 %v327, %v336
        %v341 = vmul.f32 %v328, %v336
        %343 = vset.pattern.permute.xlu0 0
        %344 = vperm.xlu0 %343, %v318
        %v345 = vpop.permute.xlu0 %344
        %v347 = vunpack.c.l.s4 839922192
        %v348 = vunpack.c.0.s8 %v347
        %v349 = vperm.slane %v345, %v348
        %v351 = vadd.f32 %v338, %v349
        %v352 = vadd.f32 %v339, %v349
        %v353 = vadd.f32 %v340, %v349
        %v354 = vadd.f32 %v341, %v349
        %v355 = vmax.f32 %v351, 0.0
        %v356 = vmax.f32 %v352, 0.0
        %v357 = vmax.f32 %v353, 0.0
        %v358 = vmax.f32 %v354, 0.0
        %v359 = vld [vmem:[%s1] sm:$0xff]
        %364 = vst [vmem:[#allocation1] ss:$2 sm:$0xff] %v355
        %s365 = scalar_lea.vmem [#allocation1], 16
        %366 = vst [vmem:[%s365] ss:$2 sm:$0xff] %v356
        %s367 = scalar_lea.vmem [#allocation1], 32
        %368 = vst [vmem:[%s367] ss:$2 sm:$0xff] %v357
        %s369 = scalar_lea.vmem [#allocation1], 48
        %370 = vst [vmem:[%s369] ss:$2 sm:$0xff] %v358
        %v371 = vld.sshfl [vmem:[#allocation1] sm:$0xff pattern:$0x75316420]
        %v372 = vld.sshfl [vmem:[#allocation1 + $0x8] sm:$0xff pattern:$0x75316420]
        %v373 = vld.sshfl [vmem:[#allocation1 + $0x10] sm:$0xff pattern:$0x75316420]
        %v374 = vld.sshfl [vmem:[#allocation1 + $0x18] sm:$0xff pattern:$0x75316420]
        %v375 = vld.sshfl [vmem:[#allocation1 + $0x20] sm:$0xff pattern:$0x75316420]
        %v376 = vld.sshfl [vmem:[#allocation1 + $0x28] sm:$0xff pattern:$0x75316420]
        %v377 = vld.sshfl [vmem:[#allocation1 + $0x30] sm:$0xff pattern:$0x75316420]
        %v378 = vld.sshfl [vmem:[#allocation1 + $0x38] sm:$0xff pattern:$0x75316420]
        %vm379 = vcmask 31744
        %v381 = vsel %vm379, %v359, 0
        %v383 = vsel %vm220, %v371, 0
        %v385 = vsel %vm220, %v372, 0
        %v387 = vsel %vm220, %v373, 0
        %v389 = vsel %vm220, %v374, 0
        %v391 = vsel %vm220, %v375, 0
        %v393 = vsel %vm220, %v376, 0
        %v395 = vsel %vm220, %v377, 0
        %v397 = vsel %vm220, %v378, 0
        %399 = vmatpush.msra.mxu0 0.0
        %400 = vmatpush.msra.mxu0 0.0
        %401 = vmatpush.msra.mxu0 0.0
        %402 = vmatpush.msra.mxu0 0.0
        %403 = vmatpush.msra.mxu0 0.0
        %404 = vmatpush.msra.mxu0 0.0
        %405 = vmatpush.msra.mxu0 0.0
        %406 = vmatpush.msra.mxu0 0.0
        %407 = vmatpush.msra.mxu0 0.0
        %408 = vmatpush.msra.mxu0 0.0
        %409 = vmatpush.msra.mxu0 0.0
        %410 = vmatpush.msra.mxu0 0.0
        %411 = vmatpush.msra.mxu0 0.0
        %412 = vmatpush.msra.mxu0 0.0
        %413 = vmatpush.msra.mxu0 0.0
        %414 = vmatpush.msra.mxu0 %v383
        %415 = vmatmul.f32.gmra.mxu0 %v381
        %v416 = vpop.f32.mrf.mxu0
        %v417 = vadd.f32 0.0, %v416
        %418 = vdwg.mxu0
        %419 = vmatpush.msra.mxu0 0.0
        %420 = vmatpush.msra.mxu0 0.0
        %421 = vmatpush.msra.mxu0 0.0
        %422 = vmatpush.msra.mxu0 0.0
        %423 = vmatpush.msra.mxu0 0.0
        %424 = vmatpush.msra.mxu0 0.0
        %425 = vmatpush.msra.mxu0 0.0
        %426 = vmatpush.msra.mxu0 0.0
        %427 = vmatpush.msra.mxu0 0.0
        %428 = vmatpush.msra.mxu0 0.0
        %429 = vmatpush.msra.mxu0 0.0
        %430 = vmatpush.msra.mxu0 0.0
        %431 = vmatpush.msra.mxu0 0.0
        %432 = vmatpush.msra.mxu0 0.0
        %433 = vmatpush.msra.mxu0 0.0
        %434 = vmatpush.msra.mxu0 %v385
        %435 = vmatmul.f32.gmra.mxu0 %v381
        %v436 = vpop.f32.mrf.mxu0
        %v437 = vadd.f32 0.0, %v436
        %438 = vdwg.mxu0
        %439 = vmatpush.msra.mxu0 0.0
        %440 = vmatpush.msra.mxu0 0.0
        %441 = vmatpush.msra.mxu0 0.0
        %442 = vmatpush.msra.mxu0 0.0
        %443 = vmatpush.msra.mxu0 0.0
        %444 = vmatpush.msra.mxu0 0.0
        %445 = vmatpush.msra.mxu0 0.0
        %446 = vmatpush.msra.mxu0 0.0
        %447 = vmatpush.msra.mxu0 0.0
        %448 = vmatpush.msra.mxu0 0.0
        %449 = vmatpush.msra.mxu0 0.0
        %450 = vmatpush.msra.mxu0 0.0
        %451 = vmatpush.msra.mxu0 0.0
        %452 = vmatpush.msra.mxu0 0.0
        %453 = vmatpush.msra.mxu0 0.0
        %454 = vmatpush.msra.mxu0 %v387
        %455 = vmatmul.f32.gmra.mxu0 %v381
        %v456 = vpop.f32.mrf.mxu0
        %v457 = vadd.f32 0.0, %v456
        %458 = vdwg.mxu0
        %459 = vmatpush.msra.mxu0 0.0
        %460 = vmatpush.msra.mxu0 0.0
        %461 = vmatpush.msra.mxu0 0.0
        %462 = vmatpush.msra.mxu0 0.0
        %463 = vmatpush.msra.mxu0 0.0
        %464 = vmatpush.msra.mxu0 0.0
        %465 = vmatpush.msra.mxu0 0.0
        %466 = vmatpush.msra.mxu0 0.0
        %467 = vmatpush.msra.mxu0 0.0
        %468 = vmatpush.msra.mxu0 0.0
        %469 = vmatpush.msra.mxu0 0.0
        %470 = vmatpush.msra.mxu0 0.0
        %471 = vmatpush.msra.mxu0 0.0
        %472 = vmatpush.msra.mxu0 0.0
        %473 = vmatpush.msra.mxu0 0.0
        %474 = vmatpush.msra.mxu0 %v389
        %475 = vmatmul.f32.gmra.mxu0 %v381
        %v476 = vpop.f32.mrf.mxu0
        %v477 = vadd.f32 0.0, %v476
        %478 = vdwg.mxu0
        %479 = vmatpush.msra.mxu0 0.0
        %480 = vmatpush.msra.mxu0 0.0
        %481 = vmatpush.msra.mxu0 0.0
        %482 = vmatpush.msra.mxu0 0.0
        %483 = vmatpush.msra.mxu0 0.0
        %484 = vmatpush.msra.mxu0 0.0
        %485 = vmatpush.msra.mxu0 0.0
        %486 = vmatpush.msra.mxu0 0.0
        %487 = vmatpush.msra.mxu0 0.0
        %488 = vmatpush.msra.mxu0 0.0
        %489 = vmatpush.msra.mxu0 0.0
        %490 = vmatpush.msra.mxu0 0.0
        %491 = vmatpush.msra.mxu0 0.0
        %492 = vmatpush.msra.mxu0 0.0
        %493 = vmatpush.msra.mxu0 0.0
        %494 = vmatpush.msra.mxu0 %v391
        %495 = vmatmul.f32.gmra.mxu0 %v381
        %v496 = vpop.f32.mrf.mxu0
        %v497 = vadd.f32 0.0, %v496
        %498 = vdwg.mxu0
        %499 = vmatpush.msra.mxu0 0.0
        %500 = vmatpush.msra.mxu0 0.0
        %501 = vmatpush.msra.mxu0 0.0
        %502 = vmatpush.msra.mxu0 0.0
        %503 = vmatpush.msra.mxu0 0.0
        %504 = vmatpush.msra.mxu0 0.0
        %505 = vmatpush.msra.mxu0 0.0
        %506 = vmatpush.msra.mxu0 0.0
        %507 = vmatpush.msra.mxu0 0.0
        %508 = vmatpush.msra.mxu0 0.0
        %509 = vmatpush.msra.mxu0 0.0
        %510 = vmatpush.msra.mxu0 0.0
        %511 = vmatpush.msra.mxu0 0.0
        %512 = vmatpush.msra.mxu0 0.0
        %513 = vmatpush.msra.mxu0 0.0
        %514 = vmatpush.msra.mxu0 %v393
        %515 = vmatmul.f32.gmra.mxu0 %v381
        %v516 = vpop.f32.mrf.mxu0
        %v517 = vadd.f32 0.0, %v516
        %518 = vdwg.mxu0
        %519 = vmatpush.msra.mxu0 0.0
        %520 = vmatpush.msra.mxu0 0.0
        %521 = vmatpush.msra.mxu0 0.0
        %522 = vmatpush.msra.mxu0 0.0
        %523 = vmatpush.msra.mxu0 0.0
        %524 = vmatpush.msra.mxu0 0.0
        %525 = vmatpush.msra.mxu0 0.0
        %526 = vmatpush.msra.mxu0 0.0
        %527 = vmatpush.msra.mxu0 0.0
        %528 = vmatpush.msra.mxu0 0.0
        %529 = vmatpush.msra.mxu0 0.0
        %530 = vmatpush.msra.mxu0 0.0
        %531 = vmatpush.msra.mxu0 0.0
        %532 = vmatpush.msra.mxu0 0.0
        %533 = vmatpush.msra.mxu0 0.0
        %534 = vmatpush.msra.mxu0 %v395
        %535 = vmatmul.f32.gmra.mxu0 %v381
        %v536 = vpop.f32.mrf.mxu0
        %v537 = vadd.f32 0.0, %v536
        %538 = vdwg.mxu0
        %539 = vmatpush.msra.mxu0 0.0
        %540 = vmatpush.msra.mxu0 0.0
        %541 = vmatpush.msra.mxu0 0.0
        %542 = vmatpush.msra.mxu0 0.0
        %543 = vmatpush.msra.mxu0 0.0
        %544 = vmatpush.msra.mxu0 0.0
        %545 = vmatpush.msra.mxu0 0.0
        %546 = vmatpush.msra.mxu0 0.0
        %547 = vmatpush.msra.mxu0 0.0
        %548 = vmatpush.msra.mxu0 0.0
        %549 = vmatpush.msra.mxu0 0.0
        %550 = vmatpush.msra.mxu0 0.0
        %551 = vmatpush.msra.mxu0 0.0
        %552 = vmatpush.msra.mxu0 0.0
        %553 = vmatpush.msra.mxu0 0.0
        %554 = vmatpush.msra.mxu0 %v397
        %555 = vmatmul.f32.gmra.mxu0 %v381
        %v556 = vpop.f32.mrf.mxu0
        %v557 = vadd.f32 0.0, %v556
        %558 = vdwg.mxu0
        %559 = vst [vmem:[%s188] sm:$0xff] %v417
        %560 = vst [vmem:[%s188 + $0x8] sm:$0xff] %v437
        %561 = vst [vmem:[%s188 + $0x10] sm:$0xff] %v457
        %562 = vst [vmem:[%s188 + $0x18] sm:$0xff] %v477
        %563 = vst [vmem:[%s188 + $0x20] sm:$0xff] %v497
        %564 = vst [vmem:[%s188 + $0x28] sm:$0xff] %v517
        %565 = vst [vmem:[%s188 + $0x30] sm:$0xff] %v537
        %566 = vst [vmem:[%s188 + $0x38] sm:$0xff] %v557
        %s567 = sand.u32 %s96, 1
        %s568 = scalar_lea.sflag [#allocation4], %s567
        %s569 = sand.u32 %s96, 1
        %s570 = smul.addr %s569, 64
        %s571 = scalar_lea.vmem [#allocation5], %s570
        // Predicated region
        $region37: #{tpu_custom_call.1} parent=31 // pred_check
          %p572 = pneg %p106
        $region38: #{tpu_custom_call.1} parent=31 // pred_check_branch
          %574 = sbr.rel (%p572) target = $region40
        $region39: #{tpu_custom_call.1} parent=31 // pred_region
          %576 = vsyncadd %s568, 0
          %s577 = smul.addr %s20, 8
          %s578 = smul.addr %s577, 8
          %s579 = scalar_lea.hbm %s3, %s578
          %s581 = sshll.u32 %s571, 4
          %s582 = int_to_ptr.vmem [resolvable:$true] %s581
          %s583 = sshll.u32 %s579, 4
          %s584 = int_to_ptr.hbm [resolvable:$true] %s583
          %586 = dma.vmem_to_hbm [thread:$0]  %s582, 1024, %s584, %s568
        $region40: #{tpu_custom_call.1} parent=31 // pred_fallthru
          _
      $region32: #{tpu_custom_call.1} parent=5 // pred_fallthru
        _
      %p587 = scmp.le.s32.totalorder 2, %s15
      // Predicated region
      $region41: #{tpu_custom_call.1} parent=5 // pred_check
        %p588 = pneg %p587
      $region42: #{tpu_custom_call.1} parent=5 // pred_check_branch
        %590 = sbr.rel (%p588) target = $region44
      $region43: #{tpu_custom_call.1} parent=5 // pred_region
        %s591 = ssub.s32 %s15, 2
        // Predicated region
        $region45: #{tpu_custom_call.1} parent=43 // pred_check
          %p592 = pneg %p112
        $region46: #{tpu_custom_call.1} parent=43 // pred_check_branch
          %594 = sbr.rel (%p592) target = $region48
        $region47: #{tpu_custom_call.1} parent=43 // pred_region
          %s595 = sand.u32 %s97, 1
          %s596 = scalar_lea.sflag [#allocation4], %s595
          %s597 = sand.u32 %s97, 1
          %s598 = smul.addr %s597, 64
          %s599 = scalar_lea.vmem [#allocation5], %s598
          %601 = dma.done %s596, 1024
        $region48: #{tpu_custom_call.1} parent=43 // pred_fallthru
          _
      $region44: #{tpu_custom_call.1} parent=5 // pred_fallthru
        _
    $region6: #{tpu_custom_call.1} parent=1 // loop_footer
      %s19 = sadd.s32 1, %s15
    $region7: #{tpu_custom_call.1} parent=1 // loop_footer_branch
      %14 = sbr.rel target = $region3
    $region8: #{tpu_custom_call.1} parent=1 // loop_exit
      _
    %602 = vsyncpa [#allocation3], 1
    %s603 = scalar_lea.sflag [#allocation3], 1
    %604 = vsyncpa %s603, 1
    %605 = vsyncpa [#allocation4], 1
    %s606 = scalar_lea.sflag [#allocation4], 1
    %607 = vsyncpa %s606, 1

</llo_original>
